<compile_context>
chip_gen: v6e
topology: v6e:2x2x1
jax: 0.10.0
libtpu: 0.0.40
codegen_flags: <defaults>
</compile_context>

<pallas_src>
import jax
import jax.numpy as jnp
from jax.experimental import pallas as pl
from jax.experimental.pallas import tpu as pltpu

LN_EPS = 1e-5        # PyTorch nn.LayerNorm default


def _layer_norm(h, gamma, beta):
    mu = jnp.mean(h, axis=-1, keepdims=True)
    hc = h - mu                                   # computed once, reused
    var = jnp.mean(hc * hc, axis=-1, keepdims=True)
    return hc * jax.lax.rsqrt(var + LN_EPS) * gamma + beta


def critic_kernel(state_ref, action_ref, w1s_ref, w1a_ref, w2_ref, vec_ref,
                  out_ref):
    # vec_ref rows: 0=b1, 1=g1, 2=be1, 3=b2, 4=g2, 5=be2, 6=b3 (filled), 7=w3
    # Layer 1: fused "concat" matmul (state/action against split w1) + LN + ReLU
    h = (jnp.dot(state_ref[...], w1s_ref[...], preferred_element_type=jnp.float32)
         + jnp.dot(action_ref[...], w1a_ref[...], preferred_element_type=jnp.float32)
         + vec_ref[0:1, :])
    h = jnp.maximum(_layer_norm(h, vec_ref[1:2, :], vec_ref[2:3, :]), 0.0)

    # Layer 2: Linear + LayerNorm + ReLU
    h = jnp.dot(h, w2_ref[...], preferred_element_type=jnp.float32) + vec_ref[3:4, :]
    h = jnp.maximum(_layer_norm(h, vec_ref[4:5, :], vec_ref[5:6, :]), 0.0)

    # Layer 3: H -> 1 as VPU multiply + XLU lane reduction (no padded w3 slab).
    v = jnp.sum(h * vec_ref[7:8, :], axis=-1, keepdims=True) + vec_ref[6:7, 0:1]
    out_ref[...] = v                              # (tb, 1) dense store


def pack_params(params, state_dim):
    """One-time host-side repack: split w1, pack all small vectors + w3 row."""
    hidden = params["w1"].shape[1]
    w1_s = params["w1"][:state_dim, :]
    w1_a = params["w1"][state_dim:, :]
    vecs = jnp.zeros((8, hidden), jnp.float32)
    vecs = vecs.at[0].set(params["b1"][0])
    vecs = vecs.at[1].set(params["g1"][0])
    vecs = vecs.at[2].set(params["be1"][0])
    vecs = vecs.at[3].set(params["b2"][0])
    vecs = vecs.at[4].set(params["g2"][0])
    vecs = vecs.at[5].set(params["be2"][0])
    vecs = vecs.at[6].set(jnp.full((hidden,), params["b3"][0, 0], jnp.float32))
    vecs = vecs.at[7].set(params["w3"][:, 0])
    return {"w1_s": w1_s, "w1_a": w1_a, "w2": params["w2"], "vecs": vecs}


def _round_up(x, m):
    return ((x + m - 1) // m) * m


def critic_forward(state, action, packed):
    """Pallas Critic forward. state: [B, S], action: [B, A] -> [B, 1]."""
    state = state.astype(jnp.float32)
    action = action.astype(jnp.float32)
    B, S = state.shape
    A = action.shape[1]
    H = packed["w2"].shape[0]

    # Batch tile: multiple of 8 sublanes, capped at 512, and chosen so that
    # mid/large batches get >= 2 grid steps (megacore sharding + DMA overlap).
    if B <= 8:
        tb = 8
    else:
        tb = min(512, _round_up(pl.cdiv(B, 4), 8))
    grid = (pl.cdiv(B, tb),)          # no jnp.pad: partial tail tile is fine

    in_specs = [
        pl.BlockSpec((tb, S), lambda i: (i, 0)),   # state tile
        pl.BlockSpec((tb, A), lambda i: (i, 0)),   # action tile
        pl.BlockSpec((S, H), lambda i: (0, 0)),    # w1_s (resident)
        pl.BlockSpec((A, H), lambda i: (0, 0)),    # w1_a (resident)
        pl.BlockSpec((H, H), lambda i: (0, 0)),    # w2   (resident)
        pl.BlockSpec((8, H), lambda i: (0, 0)),    # packed vectors + w3 row
    ]
    out_spec = pl.BlockSpec((tb, 1), lambda i: (i, 0))

    # VMEM budget: double-buffered weights + streamed tiles + f32 intermediates.
    resident = 2 * 4 * (S * H + A * H + H * H + 8 * H)
    streamed = 2 * 4 * tb * (S + A + 1)
    live = 8 * 4 * tb * H
    vmem_limit = int(min(max(resident + streamed + live + (8 << 20), 16 << 20),
                         48 << 20))

    out = pl.pallas_call(
        critic_kernel,
        out_shape=jax.ShapeDtypeStruct((B, 1), jnp.float32),
        grid=grid,
        in_specs=in_specs,
        out_specs=out_spec,
        compiler_params=pltpu.CompilerParams(
            dimension_semantics=("parallel",),
            vmem_limit_bytes=vmem_limit),
    )(state, action,
      packed["w1_s"], packed["w1_a"], packed["w2"], packed["vecs"])

    return out


def init_params(key, state_dim, action_dim, hidden_dim):
    """Deterministic synthetic init (shapes match the PyTorch module)."""
    d_in = state_dim + action_dim
    ks = jax.random.split(key, 6)

    def lin(kw, kb, fan_in, fan_out):
        bound = 1.0 / jnp.sqrt(fan_in)
        w = jax.random.uniform(kw, (fan_in, fan_out), jnp.float32, -bound, bound)
        b = jax.random.uniform(kb, (1, fan_out), jnp.float32, -bound, bound)
        return w, b

    w1, b1 = lin(ks[0], ks[1], d_in, hidden_dim)
    w2, b2 = lin(ks[2], ks[3], hidden_dim, hidden_dim)
    w3, b3 = lin(ks[4], ks[5], hidden_dim, 1)
    return {
        "w1": w1, "b1": b1,
        "g1": jnp.ones((1, hidden_dim), jnp.float32),
        "be1": jnp.zeros((1, hidden_dim), jnp.float32),
        "w2": w2, "b2": b2,
        "g2": jnp.ones((1, hidden_dim), jnp.float32),
        "be2": jnp.zeros((1, hidden_dim), jnp.float32),
        "w3": w3, "b3": b3,
    }


def critic_forward_ref(state, action, p):
    """Plain-JAX reference mirroring the PyTorch forward."""
    x = jnp.concatenate([state, action], axis=-1)
    h = x @ p["w1"] + p["b1"]
    h = jnp.maximum(_layer_norm(h, p["g1"], p["be1"]), 0.0)
    h = h @ p["w2"] + p["b2"]
    h = jnp.maximum(_layer_norm(h, p["g2"], p["be2"]), 0.0)
    return h @ p["w3"] + p["b3"]


if __name__ == "__main__":
    # Small RLConfig-consistent shapes; batch=10 exercises the multi-tile grid
    # and the partial (masked-writeback) tail tile.
    batch, state_dim, action_dim, hidden_dim = 10, 12, 4, 32

    key = jax.random.PRNGKey(0)
    k_s, k_a, k_p = jax.random.split(key, 3)
    state = jax.random.normal(k_s, (batch, state_dim), jnp.float32)
    action = jax.random.normal(k_a, (batch, action_dim), jnp.float32)
    params = init_params(k_p, state_dim, action_dim, hidden_dim)

    packed = jax.tree_util.tree_map(jax.block_until_ready,
                                    pack_params(params, state_dim))

    out = critic_forward(state, action, packed)
    out = jax.block_until_ready(out)

    ref = critic_forward_ref(state, action, params)
    assert out.shape == (batch, 1), out.shape
    assert jnp.allclose(out, ref, atol=1e-5, rtol=1e-5), (out, ref)

    print("KERNEL_OK")
</pallas_src>

<mosaic_0001>
module attributes {stable_mosaic.version = 11 : i64} {
  func.func @critic_kernel(%arg0: i32, %arg1: memref<8x12xf32, #tpu.memory_space<vmem>>, %arg2: memref<8x4xf32, #tpu.memory_space<vmem>>, %arg3: memref<12x32xf32, #tpu.memory_space<vmem>>, %arg4: memref<4x32xf32, #tpu.memory_space<vmem>>, %arg5: memref<32x32xf32, #tpu.memory_space<vmem>>, %arg6: memref<8x32xf32, #tpu.memory_space<vmem>>, %arg7: memref<8x1xf32, #tpu.memory_space<vmem>>) attributes {dimension_semantics = [#tpu.dimension_semantics<parallel>], iteration_bounds = array<i64: 2>, scalar_prefetch = 0 : i64, scratch_operands = 0 : i64, tpu.core_type = #tpu.core_type<tc>, window_params = [{transform_indices = @transform_0, window_bounds = array<i64: 8, 12>}, {transform_indices = @transform_1, window_bounds = array<i64: 8, 4>}, {pipeline_mode = #tpu.pipeline_mode<synchronous>, transform_indices = @transform_2, window_bounds = array<i64: 12, 32>}, {pipeline_mode = #tpu.pipeline_mode<synchronous>, transform_indices = @transform_3, window_bounds = array<i64: 4, 32>}, {pipeline_mode = #tpu.pipeline_mode<synchronous>, transform_indices = @transform_4, window_bounds = array<i64: 32, 32>}, {pipeline_mode = #tpu.pipeline_mode<synchronous>, transform_indices = @transform_5, window_bounds = array<i64: 8, 32>}, {transform_indices = @transform_6, window_bounds = array<i64: 8, 1>}]} {
    %c0 = arith.constant 0 : index
    %c0_0 = arith.constant 0 : index
    %0 = vector.load %arg1[%c0, %c0_0] : memref<8x12xf32, #tpu.memory_space<vmem>>, vector<8x12xf32>
    %c0_1 = arith.constant 0 : index
    %c0_2 = arith.constant 0 : index
    %1 = vector.load %arg3[%c0_1, %c0_2] : memref<12x32xf32, #tpu.memory_space<vmem>>, vector<12x32xf32>
    %cst = arith.constant dense<0.000000e+00> : vector<8x32xf32>
    %2 = tpu.matmul %0, %1, %cst {dimension_numbers = #tpu.dot_dimension_numbers<[1], [0], [0], [1], [0, 0, 1, 1], [], []>} : vector<8x12xf32>, vector<12x32xf32>, vector<8x32xf32> -> vector<8x32xf32>
    %c0_3 = arith.constant 0 : index
    %c0_4 = arith.constant 0 : index
    %3 = vector.load %arg2[%c0_3, %c0_4] : memref<8x4xf32, #tpu.memory_space<vmem>>, vector<8x4xf32>
    %c0_5 = arith.constant 0 : index
    %c0_6 = arith.constant 0 : index
    %4 = vector.load %arg4[%c0_5, %c0_6] : memref<4x32xf32, #tpu.memory_space<vmem>>, vector<4x32xf32>
    %cst_7 = arith.constant dense<0.000000e+00> : vector<8x32xf32>
    %5 = tpu.matmul %3, %4, %cst_7 {dimension_numbers = #tpu.dot_dimension_numbers<[1], [0], [0], [1], [0, 0, 1, 1], [], []>} : vector<8x4xf32>, vector<4x32xf32>, vector<8x32xf32> -> vector<8x32xf32>
    %6 = arith.addf %2, %5 : vector<8x32xf32>
    %c0_8 = arith.constant 0 : index
    %c0_9 = arith.constant 0 : index
    %7 = vector.load %arg6[%c0_8, %c0_9] : memref<8x32xf32, #tpu.memory_space<vmem>>, vector<1x32xf32>
    %8 = vector.broadcast %7 : vector<1x32xf32> to vector<8x32xf32>
    %9 = arith.addf %6, %8 : vector<8x32xf32>
    %c1 = arith.constant 1 : index
    %c0_10 = arith.constant 0 : index
    %10 = vector.load %arg6[%c1, %c0_10] : memref<8x32xf32, #tpu.memory_space<vmem>>, vector<1x32xf32>
    %c2 = arith.constant 2 : index
    %c0_11 = arith.constant 0 : index
    %11 = vector.load %arg6[%c2, %c0_11] : memref<8x32xf32, #tpu.memory_space<vmem>>, vector<1x32xf32>
    %cst_12 = arith.constant dense<0.000000e+00> : vector<8xf32>
    %12 = vector.multi_reduction <add>, %9, %cst_12 [1] : vector<8x32xf32> to vector<8xf32>
    %13 = vector.shape_cast %12 : vector<8xf32> to vector<8x1xf32>
    %cst_13 = arith.constant 3.200000e+01 : f32
    %14 = vector.broadcast %cst_13 : f32 to vector<8x1xf32>
    %15 = arith.divf %13, %14 : vector<8x1xf32>
    %16 = vector.broadcast %15 : vector<8x1xf32> to vector<8x32xf32>
    %17 = arith.subf %9, %16 : vector<8x32xf32>
    %18 = arith.mulf %17, %17 : vector<8x32xf32>
    %cst_14 = arith.constant dense<0.000000e+00> : vector<8xf32>
    %19 = vector.multi_reduction <add>, %18, %cst_14 [1] : vector<8x32xf32> to vector<8xf32>
    %20 = vector.shape_cast %19 : vector<8xf32> to vector<8x1xf32>
    %cst_15 = arith.constant 3.200000e+01 : f32
    %21 = vector.broadcast %cst_15 : f32 to vector<8x1xf32>
    %22 = arith.divf %20, %21 : vector<8x1xf32>
    %cst_16 = arith.constant 9.99999974E-6 : f32
    %23 = vector.broadcast %cst_16 : f32 to vector<8x1xf32>
    %24 = arith.addf %22, %23 : vector<8x1xf32>
    %25 = math.rsqrt %24 : vector<8x1xf32>
    %26 = vector.broadcast %25 : vector<8x1xf32> to vector<8x32xf32>
    %27 = arith.mulf %17, %26 : vector<8x32xf32>
    %28 = vector.broadcast %10 : vector<1x32xf32> to vector<8x32xf32>
    %29 = arith.mulf %27, %28 : vector<8x32xf32>
    %30 = vector.broadcast %11 : vector<1x32xf32> to vector<8x32xf32>
    %31 = arith.addf %29, %30 : vector<8x32xf32>
    %cst_17 = arith.constant 0.000000e+00 : f32
    %32 = vector.broadcast %cst_17 : f32 to vector<8x32xf32>
    %33 = arith.maximumf %31, %32 : vector<8x32xf32>
    %c0_18 = arith.constant 0 : index
    %c0_19 = arith.constant 0 : index
    %34 = vector.load %arg5[%c0_18, %c0_19] : memref<32x32xf32, #tpu.memory_space<vmem>>, vector<32x32xf32>
    %cst_20 = arith.constant dense<0.000000e+00> : vector<8x32xf32>
    %35 = tpu.matmul %33, %34, %cst_20 {dimension_numbers = #tpu.dot_dimension_numbers<[1], [0], [0], [1], [0, 0, 1, 1], [], []>} : vector<8x32xf32>, vector<32x32xf32>, vector<8x32xf32> -> vector<8x32xf32>
    %c3 = arith.constant 3 : index
    %c0_21 = arith.constant 0 : index
    %36 = vector.load %arg6[%c3, %c0_21] : memref<8x32xf32, #tpu.memory_space<vmem>>, vector<1x32xf32>
    %37 = vector.broadcast %36 : vector<1x32xf32> to vector<8x32xf32>
    %38 = arith.addf %35, %37 : vector<8x32xf32>
    %c4 = arith.constant 4 : index
    %c0_22 = arith.constant 0 : index
    %39 = vector.load %arg6[%c4, %c0_22] : memref<8x32xf32, #tpu.memory_space<vmem>>, vector<1x32xf32>
    %c5 = arith.constant 5 : index
    %c0_23 = arith.constant 0 : index
    %40 = vector.load %arg6[%c5, %c0_23] : memref<8x32xf32, #tpu.memory_space<vmem>>, vector<1x32xf32>
    %cst_24 = arith.constant dense<0.000000e+00> : vector<8xf32>
    %41 = vector.multi_reduction <add>, %38, %cst_24 [1] : vector<8x32xf32> to vector<8xf32>
    %42 = vector.shape_cast %41 : vector<8xf32> to vector<8x1xf32>
    %cst_25 = arith.constant 3.200000e+01 : f32
    %43 = vector.broadcast %cst_25 : f32 to vector<8x1xf32>
    %44 = arith.divf %42, %43 : vector<8x1xf32>
    %45 = vector.broadcast %44 : vector<8x1xf32> to vector<8x32xf32>
    %46 = arith.subf %38, %45 : vector<8x32xf32>
    %47 = arith.mulf %46, %46 : vector<8x32xf32>
    %cst_26 = arith.constant dense<0.000000e+00> : vector<8xf32>
    %48 = vector.multi_reduction <add>, %47, %cst_26 [1] : vector<8x32xf32> to vector<8xf32>
    %49 = vector.shape_cast %48 : vector<8xf32> to vector<8x1xf32>
    %cst_27 = arith.constant 3.200000e+01 : f32
    %50 = vector.broadcast %cst_27 : f32 to vector<8x1xf32>
    %51 = arith.divf %49, %50 : vector<8x1xf32>
    %cst_28 = arith.constant 9.99999974E-6 : f32
    %52 = vector.broadcast %cst_28 : f32 to vector<8x1xf32>
    %53 = arith.addf %51, %52 : vector<8x1xf32>
    %54 = math.rsqrt %53 : vector<8x1xf32>
    %55 = vector.broadcast %54 : vector<8x1xf32> to vector<8x32xf32>
    %56 = arith.mulf %46, %55 : vector<8x32xf32>
    %57 = vector.broadcast %39 : vector<1x32xf32> to vector<8x32xf32>
    %58 = arith.mulf %56, %57 : vector<8x32xf32>
    %59 = vector.broadcast %40 : vector<1x32xf32> to vector<8x32xf32>
    %60 = arith.addf %58, %59 : vector<8x32xf32>
    %cst_29 = arith.constant 0.000000e+00 : f32
    %61 = vector.broadcast %cst_29 : f32 to vector<8x32xf32>
    %62 = arith.maximumf %60, %61 : vector<8x32xf32>
    %c7 = arith.constant 7 : index
    %c0_30 = arith.constant 0 : index
    %63 = vector.load %arg6[%c7, %c0_30] : memref<8x32xf32, #tpu.memory_space<vmem>>, vector<1x32xf32>
    %64 = vector.broadcast %63 : vector<1x32xf32> to vector<8x32xf32>
    %65 = arith.mulf %62, %64 : vector<8x32xf32>
    %cst_31 = arith.constant dense<0.000000e+00> : vector<8xf32>
    %66 = vector.multi_reduction <add>, %65, %cst_31 [1] : vector<8x32xf32> to vector<8xf32>
    %67 = vector.shape_cast %66 : vector<8xf32> to vector<8x1xf32>
    %c6 = arith.constant 6 : index
    %c0_32 = arith.constant 0 : index
    %68 = vector.load %arg6[%c6, %c0_32] : memref<8x32xf32, #tpu.memory_space<vmem>>, vector<1x1xf32>
    %69 = vector.broadcast %68 : vector<1x1xf32> to vector<8x1xf32>
    %70 = arith.addf %67, %69 : vector<8x1xf32>
    %c0_33 = arith.constant 0 : index
    %c0_34 = arith.constant 0 : index
    %71 = vector.load %arg7[%c0_33, %c0_34] : memref<8x1xf32, #tpu.memory_space<vmem>>, vector<8x1xf32>
    tpu.vector_store %arg7[%c0_33, %c0_34], %70 {strides = array<i32>} : memref<8x1xf32, #tpu.memory_space<vmem>>, vector<8x1xf32>,
    return
  }
  func.func @transform_0(%arg0: i32) -> (i32, i32) {
    %c0_i32 = arith.constant 0 : i32
    %c0_i32_0 = arith.constant 0 : i32
    return %arg0, %c0_i32 : i32, i32
  }
  func.func @transform_1(%arg0: i32) -> (i32, i32) {
    %c0_i32 = arith.constant 0 : i32
    %c0_i32_0 = arith.constant 0 : i32
    return %arg0, %c0_i32 : i32, i32
  }
  func.func @transform_2(%arg0: i32) -> (i32, i32) {
    %c0_i32 = arith.constant 0 : i32
    %c0_i32_0 = arith.constant 0 : i32
    %c0_i32_1 = arith.constant 0 : i32
    return %c0_i32, %c0_i32_0 : i32, i32
  }
  func.func @transform_3(%arg0: i32) -> (i32, i32) {
    %c0_i32 = arith.constant 0 : i32
    %c0_i32_0 = arith.constant 0 : i32
    %c0_i32_1 = arith.constant 0 : i32
    return %c0_i32, %c0_i32_0 : i32, i32
  }
  func.func @transform_4(%arg0: i32) -> (i32, i32) {
    %c0_i32 = arith.constant 0 : i32
    %c0_i32_0 = arith.constant 0 : i32
    %c0_i32_1 = arith.constant 0 : i32
    return %c0_i32, %c0_i32_0 : i32, i32
  }
  func.func @transform_5(%arg0: i32) -> (i32, i32) {
    %c0_i32 = arith.constant 0 : i32
    %c0_i32_0 = arith.constant 0 : i32
    %c0_i32_1 = arith.constant 0 : i32
    return %c0_i32, %c0_i32_0 : i32, i32
  }
  func.func @transform_6(%arg0: i32) -> (i32, i32) {
    %c0_i32 = arith.constant 0 : i32
    %c0_i32_0 = arith.constant 0 : i32
    return %arg0, %c0_i32 : i32, i32
  }
}

</mosaic_0001>

<llo_original>
// kernel: tpu_custom_call.1
$region0: #{tpu_custom_call.1}
  #allocation0 [shape = 'u32[]', space=smem, size = 0x4, offset = 0x4, fixed_abs, tag = 'smem constant byte address 0x4 - core index']
  #allocation1 [shape = 'u32[144,128]{1,0:T(1,128)}', space=vmem, size = 0x12000, scoped, tag = 'internal scratch']
  %s0 = inlined_call_operand.vmem [shape: f32[10,12], index: 0, kind: input, shape index: {}]
  %s1 = inlined_call_operand.vmem [shape: f32[10,4], index: 1, kind: input, shape index: {}]
  %s2 = inlined_call_operand.hbm [shape: f32[12,32], index: 2, kind: input, shape index: {}]
  %s3 = inlined_call_operand.hbm [shape: f32[4,32], index: 3, kind: input, shape index: {}]
  %s4 = inlined_call_operand.hbm [shape: f32[32,32], index: 4, kind: input, shape index: {}]
  %s5 = inlined_call_operand.vmem [shape: f32[8,32], index: 5, kind: input, shape index: {}]
  %s6 = inlined_call_operand.vmem [shape: f32[10,1], index: 6, kind: output, shape index: {}]
  %s7 = sld [smem:[#allocation0]]
  $region69: #{tpu_custom_call.1} parent=0
    _
  %s9 = ssub.s32 1, %s7
  %s10 = scalar_select 0, %s9, %s7
  $region1: #{tpu_custom_call.1} parent=0
    #allocation2 [shape = 'u8[8192]{0}', space=vmem, size = 0x2000, scoped, tag = 'input window, operand 2, single buffered']
    #allocation3 [shape = 's32[2]{0}', space=sflag, size = 0x8, scoped, tag = 'scoped memory for tpu_custom_call.1']
    #allocation4 [shape = 'u8[2048]{0}', space=vmem, size = 0x800, scoped, tag = 'input window, operand 3, single buffered']
    #allocation5 [shape = 's32[1]{0}', space=sflag, size = 0x4, scoped, tag = 'scoped memory for tpu_custom_call.1']
    #allocation6 [shape = 'u8[16384]{0}', space=vmem, size = 0x4000, scoped, tag = 'input window, operand 4, single buffered']
    %11 = vsyncpa [#allocation3], 0
    %12 = vsyncpa [#allocation5], 0
    loop: start=0, step=1, limit=4
    $region2: #{tpu_custom_call.1} parent=1 // loop_pre_header
      _
    $region3: #{tpu_custom_call.1} parent=1 // loop_header
      %s14 = sphi 0, %s18
      %p15 = scmp.ge.s32.totalorder %s14, 4
      %s24 = sphi 0, %s26
      %s27 = sphi 0, %s24
      %s28 = sphi 0, %s27
      %s44 = sphi 0, %s28
      %s50 = sphi 0, %s52
      %s53 = sphi 0, %s50
      %s54 = sphi 0, %s53
      %s70 = sphi 0, %s54
      %s74 = sphi 0, %s74
      %s76 = sphi 0, %s74
      %s77 = sphi 0, %s76
      %s91 = sphi 0, %s77
      %s95 = sphi 0, %s95
      %s97 = sphi 0, %s95
      %s98 = sphi 0, %s97
      %s112 = sphi 0, %s98
      %s116 = sphi 0, %s116
      %s118 = sphi 0, %s116
      %s119 = sphi 0, %s118
      %s133 = sphi 0, %s119
      %s137 = sphi 0, %s137
      %s139 = sphi 0, %s137
      %s140 = sphi 0, %s139
      %s154 = sphi 0, %s140
      %s160 = sphi 0, %s162
      %s163 = sphi 0, %s160
      %s164 = sphi 0, %s163
      %s180 = sphi 0, %s164
    $region4: #{tpu_custom_call.1} parent=1 // loop_header_branch
      %17 = sbr.rel (%p15) target = $region8
    $region5: #{tpu_custom_call.1} parent=1 // loop_body
      %s19 = ssub.s32 %s14, 1
      %s20 = ssub.s32 %s14, 2
      %s21 = sadd.s32 %s14, 1
      %s22 = ssub.s32 %s14, %s21
      %p23 = scmp.eq.s32.totalorder %s22, 0
      %s25 = sadd.s32 %s24, 1
      %s26 = scalar_select %p23, %s24, %s25
      %p29 = pneg %p23
      %p30 = scmp.eq.s32.totalorder %s14, 1
      %p31 = por %p29, %p30
      %p32 = scmp.ne.s32.totalorder %s24, %s27
      %p33 = scmp.eq.s32.totalorder %s14, 0
      %p34 = por %p32, %p33
      %p35 = scmp.ne.s32.totalorder %s24, %s27
      %p36 = scmp.eq.s32.totalorder %s19, 1
      %p37 = por %p35, %p36
      %p38 = scmp.ne.s32.totalorder %s27, %s28
      %p39 = scmp.eq.s32.totalorder %s19, 0
      %p40 = por %p38, %p39
      %p41 = scmp.ne.s32.totalorder %s27, %s28
      %p42 = scmp.eq.s32.totalorder %s20, 1
      %p43 = por %p41, %p42
      %p45 = scmp.ne.s32.totalorder %s28, %s44
      %p46 = scmp.eq.s32.totalorder %s20, 0
      %p47 = por %p45, %p46
      %s48 = ssub.s32 %s14, %s21
      %p49 = scmp.eq.s32.totalorder %s48, 0
      %s51 = sadd.s32 %s50, 1
      %s52 = scalar_select %p49, %s50, %s51
      %p55 = pneg %p49
      %p56 = scmp.eq.s32.totalorder %s14, 1
      %p57 = por %p55, %p56
      %p58 = scmp.ne.s32.totalorder %s50, %s53
      %p59 = scmp.eq.s32.totalorder %s14, 0
      %p60 = por %p58, %p59
      %p61 = scmp.ne.s32.totalorder %s50, %s53
      %p62 = scmp.eq.s32.totalorder %s19, 1
      %p63 = por %p61, %p62
      %p64 = scmp.ne.s32.totalorder %s53, %s54
      %p65 = scmp.eq.s32.totalorder %s19, 0
      %p66 = por %p64, %p65
      %p67 = scmp.ne.s32.totalorder %s53, %s54
      %p68 = scmp.eq.s32.totalorder %s20, 1
      %p69 = por %p67, %p68
      %p71 = scmp.ne.s32.totalorder %s54, %s70
      %p72 = scmp.eq.s32.totalorder %s20, 0
      %p73 = por %p71, %p72
      %s75 = sadd.s32 %s74, 1
      %p78 = scmp.eq.s32.totalorder %s14, 1
      %p79 = scmp.ne.s32.totalorder %s74, %s76
      %p80 = scmp.eq.s32.totalorder %s14, 0
      %p81 = por %p79, %p80
      %p82 = scmp.ne.s32.totalorder %s74, %s76
      %p83 = scmp.eq.s32.totalorder %s19, 1
      %p84 = por %p82, %p83
      %p85 = scmp.ne.s32.totalorder %s76, %s77
      %p86 = scmp.eq.s32.totalorder %s19, 0
      %p87 = por %p85, %p86
      %p88 = scmp.ne.s32.totalorder %s76, %s77
      %p89 = scmp.eq.s32.totalorder %s20, 1
      %p90 = por %p88, %p89
      %p92 = scmp.ne.s32.totalorder %s77, %s91
      %p93 = scmp.eq.s32.totalorder %s20, 0
      %p94 = por %p92, %p93
      %s96 = sadd.s32 %s95, 1
      %p99 = scmp.eq.s32.totalorder %s14, 1
      %p100 = scmp.ne.s32.totalorder %s95, %s97
      %p101 = scmp.eq.s32.totalorder %s14, 0
      %p102 = por %p100, %p101
      %p103 = scmp.ne.s32.totalorder %s95, %s97
      %p104 = scmp.eq.s32.totalorder %s19, 1
      %p105 = por %p103, %p104
      %p106 = scmp.ne.s32.totalorder %s97, %s98
      %p107 = scmp.eq.s32.totalorder %s19, 0
      %p108 = por %p106, %p107
      %p109 = scmp.ne.s32.totalorder %s97, %s98
      %p110 = scmp.eq.s32.totalorder %s20, 1
      %p111 = por %p109, %p110
      %p113 = scmp.ne.s32.totalorder %s98, %s112
      %p114 = scmp.eq.s32.totalorder %s20, 0
      %p115 = por %p113, %p114
      %s117 = sadd.s32 %s116, 1
      %p120 = scmp.eq.s32.totalorder %s14, 1
      %p121 = scmp.ne.s32.totalorder %s116, %s118
      %p122 = scmp.eq.s32.totalorder %s14, 0
      %p123 = por %p121, %p122
      %p124 = scmp.ne.s32.totalorder %s116, %s118
      %p125 = scmp.eq.s32.totalorder %s19, 1
      %p126 = por %p124, %p125
      %p127 = scmp.ne.s32.totalorder %s118, %s119
      %p128 = scmp.eq.s32.totalorder %s19, 0
      %p129 = por %p127, %p128
      %p130 = scmp.ne.s32.totalorder %s118, %s119
      %p131 = scmp.eq.s32.totalorder %s20, 1
      %p132 = por %p130, %p131
      %p134 = scmp.ne.s32.totalorder %s119, %s133
      %p135 = scmp.eq.s32.totalorder %s20, 0
      %p136 = por %p134, %p135
      %s138 = sadd.s32 %s137, 1
      %p141 = scmp.eq.s32.totalorder %s14, 1
      %p142 = scmp.ne.s32.totalorder %s137, %s139
      %p143 = scmp.eq.s32.totalorder %s14, 0
      %p144 = por %p142, %p143
      %p145 = scmp.ne.s32.totalorder %s137, %s139
      %p146 = scmp.eq.s32.totalorder %s19, 1
      %p147 = por %p145, %p146
      %p148 = scmp.ne.s32.totalorder %s139, %s140
      %p149 = scmp.eq.s32.totalorder %s19, 0
      %p150 = por %p148, %p149
      %p151 = scmp.ne.s32.totalorder %s139, %s140
      %p152 = scmp.eq.s32.totalorder %s20, 1
      %p153 = por %p151, %p152
      %p155 = scmp.ne.s32.totalorder %s140, %s154
      %p156 = scmp.eq.s32.totalorder %s20, 0
      %p157 = por %p155, %p156
      %s158 = ssub.s32 %s14, %s21
      %p159 = scmp.eq.s32.totalorder %s158, 0
      %s161 = sadd.s32 %s160, 1
      %s162 = scalar_select %p159, %s160, %s161
      %p165 = pneg %p159
      %p166 = scmp.eq.s32.totalorder %s14, 1
      %p167 = por %p165, %p166
      %p168 = scmp.ne.s32.totalorder %s160, %s163
      %p169 = scmp.eq.s32.totalorder %s14, 0
      %p170 = por %p168, %p169
      %p171 = scmp.ne.s32.totalorder %s160, %s163
      %p172 = scmp.eq.s32.totalorder %s19, 1
      %p173 = por %p171, %p172
      %p174 = scmp.ne.s32.totalorder %s163, %s164
      %p175 = scmp.eq.s32.totalorder %s19, 0
      %p176 = por %p174, %p175
      %p177 = scmp.ne.s32.totalorder %s163, %s164
      %p178 = scmp.eq.s32.totalorder %s20, 1
      %p179 = por %p177, %p178
      %p181 = scmp.ne.s32.totalorder %s164, %s180
      %p182 = scmp.eq.s32.totalorder %s20, 0
      %p183 = por %p181, %p182
      %p184 = scmp.le.s32.totalorder 1, %s14
      %p185 = scmp.lt.s32.totalorder %s14, 3
      %p186 = pnand %p184, %p185
      %p187 = pneg %p186
      // Predicated region
      $region9: #{tpu_custom_call.1} parent=5 // pred_check
        _
      $region10: #{tpu_custom_call.1} parent=5 // pred_check_branch
        %189 = sbr.rel (%p186) target = $region12
      $region11: #{tpu_custom_call.1} parent=5 // pred_region
        %s190 = ssub.s32 %s14, 1
        // Predicated region
        $region13: #{tpu_custom_call.1} parent=11 // pred_check
          %p191 = pneg %p87
        $region14: #{tpu_custom_call.1} parent=11 // pred_check_branch
          %193 = sbr.rel (%p191) target = $region16
        $region15: #{tpu_custom_call.1} parent=11 // pred_region
          %s195 = ssub.s32 256, 256
          %196 = vsyncadd [#allocation3], %s195
          %s197 = sshll.u32 [#allocation2], 4
          %s198 = int_to_ptr.vmem [resolvable:$true] %s197
          %203 = dma.hbm_to_vmem [thread:$0]  %s2, 256, %s198, [#allocation3], 128, 128, 8
        $region16: #{tpu_custom_call.1} parent=11 // pred_fallthru
          _
        // Predicated region
        $region17: #{tpu_custom_call.1} parent=11 // pred_check
          %p204 = pneg %p108
        $region18: #{tpu_custom_call.1} parent=11 // pred_check_branch
          %206 = sbr.rel (%p204) target = $region20
        $region19: #{tpu_custom_call.1} parent=11 // pred_region
          %s208 = ssub.s32 64, 64
          %209 = vsyncadd [#allocation5], %s208
          %s211 = sshll.u32 [#allocation4], 4
          %s212 = int_to_ptr.vmem [resolvable:$true] %s211
          %214 = dma.hbm_to_vmem [thread:$0]  %s3, 64, %s212, [#allocation5]
        $region20: #{tpu_custom_call.1} parent=11 // pred_fallthru
          _
        // Predicated region
        $region21: #{tpu_custom_call.1} parent=11 // pred_check
          %p215 = pneg %p129
        $region22: #{tpu_custom_call.1} parent=11 // pred_check_branch
          %217 = sbr.rel (%p215) target = $region24
        $region23: #{tpu_custom_call.1} parent=11 // pred_region
          %s219 = ssub.s32 512, 512
          %220 = vsyncadd [#allocation5], %s219
          %s221 = sshll.u32 [#allocation6], 4
          %s222 = int_to_ptr.vmem [resolvable:$true] %s221
          %227 = dma.hbm_to_vmem [thread:$0]  %s4, 512, %s222, [#allocation5], 128, 128, 8
        $region24: #{tpu_custom_call.1} parent=11 // pred_fallthru
          _
        // Predicated region
        $region25: #{tpu_custom_call.1} parent=11 // pred_check
          %p228 = pneg %p150
        $region26: #{tpu_custom_call.1} parent=11 // pred_check_branch
          %230 = sbr.rel (%p228) target = $region28
        $region27: #{tpu_custom_call.1} parent=11 // pred_region
          _
        $region28: #{tpu_custom_call.1} parent=11 // pred_fallthru
          _
      $region12: #{tpu_custom_call.1} parent=5 // pred_fallthru
        _
      %p231 = scmp.lt.s32.totalorder %s14, 2
      // Predicated region
      $region29: #{tpu_custom_call.1} parent=5 // pred_check
        %p232 = pneg %p231
      $region30: #{tpu_custom_call.1} parent=5 // pred_check_branch
        %234 = sbr.rel (%p232) target = $region32
      $region31: #{tpu_custom_call.1} parent=5 // pred_region
        // Predicated region
        $region33: #{tpu_custom_call.1} parent=31 // pred_check
          %p235 = pneg %p34
        $region34: #{tpu_custom_call.1} parent=31 // pred_check_branch
          %237 = sbr.rel (%p235) target = $region36
        $region35: #{tpu_custom_call.1} parent=31 // pred_region
          %p238 = scmp.lt.s32.totalorder %s14, 1
          %s239 = scalar_select %p238, %s14, 1
          %s240 = smul.addr %s239, 8
          %s241 = scalar_lea.vmem %s0, %s240
        $region36: #{tpu_custom_call.1} parent=31 // pred_fallthru
          _
        // Predicated region
        $region37: #{tpu_custom_call.1} parent=31 // pred_check
          %p242 = pneg %p60
        $region38: #{tpu_custom_call.1} parent=31 // pred_check_branch
          %244 = sbr.rel (%p242) target = $region40
        $region39: #{tpu_custom_call.1} parent=31 // pred_region
          %p245 = scmp.lt.s32.totalorder %s14, 1
          %s246 = scalar_select %p245, %s14, 1
          %s247 = smul.addr %s246, 8
          %s248 = scalar_lea.vmem %s1, %s247
        $region40: #{tpu_custom_call.1} parent=31 // pred_fallthru
          _
      $region32: #{tpu_custom_call.1} parent=5 // pred_fallthru
        _
      %p249 = scmp.le.s32.totalorder 1, %s14
      %p250 = scmp.lt.s32.totalorder %s14, 3
      %p251 = pnand %p249, %p250
      %p252 = pneg %p251
      // Predicated region
      $region41: #{tpu_custom_call.1} parent=5 // pred_check
        _
      $region42: #{tpu_custom_call.1} parent=5 // pred_check_branch
        %254 = sbr.rel (%p251) target = $region44
      $region43: #{tpu_custom_call.1} parent=5 // pred_region
        %s255 = ssub.s32 %s14, 1
        // Predicated region
        $region45: #{tpu_custom_call.1} parent=43 // pred_check
          %p256 = pneg %p87
        $region46: #{tpu_custom_call.1} parent=43 // pred_check_branch
          %258 = sbr.rel (%p256) target = $region48
        $region47: #{tpu_custom_call.1} parent=43 // pred_region
          %259 = dma.done [#allocation3], 256
        $region48: #{tpu_custom_call.1} parent=43 // pred_fallthru
          _
        // Predicated region
        $region49: #{tpu_custom_call.1} parent=43 // pred_check
          %p260 = pneg %p108
        $region50: #{tpu_custom_call.1} parent=43 // pred_check_branch
          %262 = sbr.rel (%p260) target = $region52
        $region51: #{tpu_custom_call.1} parent=43 // pred_region
          %263 = dma.done [#allocation5], 64
        $region52: #{tpu_custom_call.1} parent=43 // pred_fallthru
          _
        // Predicated region
        $region53: #{tpu_custom_call.1} parent=43 // pred_check
          %p264 = pneg %p129
        $region54: #{tpu_custom_call.1} parent=43 // pred_check_branch
          %266 = sbr.rel (%p264) target = $region56
        $region55: #{tpu_custom_call.1} parent=43 // pred_region
          %267 = dma.done [#allocation5], 512
        $region56: #{tpu_custom_call.1} parent=43 // pred_fallthru
          _
        %p268 = scmp.lt.s32.totalorder %s19, 1
        %s269 = scalar_select %p268, %s19, 1
        %s270 = smul.addr %s269, 8
        %s271 = scalar_lea.vmem %s0, %s270
        %p272 = pneg %p40
        %p273 = pneg %p37
        %p274 = scmp.lt.s32.totalorder %s19, 1
        %s275 = scalar_select %p274, %s19, 1
        %s276 = smul.addr %s275, 8
        %s277 = scalar_lea.vmem %s1, %s276
        %p278 = pneg %p66
        %p279 = pneg %p63
        %p280 = pneg %p87
        %p281 = pneg %p84
        %p282 = pneg %p108
        %p283 = pneg %p105
        %p284 = pneg %p129
        %p285 = pneg %p126
        %p286 = pneg %p150
        %p287 = pneg %p147
        %p288 = pneg %p176
        %p289 = pneg %p173
        %p290 = scmp.lt.s32.totalorder %s19, 1
        %s291 = scalar_select %p290, %s19, 1
        %s292 = smul.addr %s291, 8
        %s293 = scalar_lea.vmem %s6, %s292
        %p294 = scmp.lt.s32.totalorder %s19, 1
        %s295 = scalar_select %p294, %s19, 1
        %s296 = smul.addr %s295, 8
        %s297 = scalar_lea.vmem %s0, %s296
        %p298 = scmp.lt.s32.totalorder %s19, 1
        %s299 = scalar_select %p298, %s19, 1
        %s300 = smul.addr %s299, 8
        %s301 = scalar_lea.vmem %s1, %s300
        %p302 = scmp.lt.s32.totalorder %s19, 1
        %s303 = scalar_select %p302, %s19, 1
        %s304 = smul.addr %s303, 8
        %s305 = scalar_lea.vmem %s6, %s304
        %v306 = vld [vmem:[%s297] sm:$0xff]
        %v307 = vld [vmem:[#allocation2] sm:$0xff]
        %v308 = vld [vmem:[#allocation2 + $0x8] sm:$0xf]
        %v309 = vld [vmem:[%s301] sm:$0xff]
        %v310 = vld [vmem:[#allocation4] sm:$0xf]
        %vm311 = vcmask 31744
        %v313 = vsel %vm311, %v309, 0
        %vm315 = vcmask 1043456
        %v317 = vsel %vm315, %v310, 0
        %319 = vmatprep.subr.mxu0 0.0
        %320 = vmatpush1.msra.mxu0 0.0
        %321 = vmatprep.subr.mxu0 0.0
        %322 = vmatpush1.msra.mxu0 0.0
        %323 = vmatprep.subr.mxu0 0.0
        %324 = vmatpush1.msra.mxu0 0.0
        %325 = vmatprep.subr.mxu0 0.0
        %326 = vmatpush1.msra.mxu0 0.0
        %327 = vmatprep.subr.mxu0 0.0
        %328 = vmatpush1.msra.mxu0 0.0
        %329 = vmatprep.subr.mxu0 0.0
        %330 = vmatpush1.msra.mxu0 0.0
        %331 = vmatprep.subr.mxu0 0.0
        %332 = vmatpush1.msra.mxu0 0.0
        %333 = vmatprep.subr.mxu0 0.0
        %334 = vmatpush1.msra.mxu0 0.0
        %335 = vmatprep.subr.mxu0 0.0
        %336 = vmatpush1.msra.mxu0 0.0
        %337 = vmatprep.subr.mxu0 0.0
        %338 = vmatpush1.msra.mxu0 0.0
        %339 = vmatprep.subr.mxu0 0.0
        %340 = vmatpush1.msra.mxu0 0.0
        %341 = vmatprep.subr.mxu0 0.0
        %342 = vmatpush1.msra.mxu0 0.0
        %343 = vmatprep.subr.mxu0 0.0
        %344 = vmatpush1.msra.mxu0 0.0
        %345 = vmatprep.subr.mxu0 0.0
        %346 = vmatpush1.msra.mxu0 0.0
        %347 = vmatprep.subr.mxu0 0.0
        %348 = vmatpush1.msra.mxu0 0.0
        %349 = vmatprep.subr.mxu0 0.0
        %350 = vmatpush1.msra.mxu0 %v317
        %351 = vmatprep.subr.mxu0 0.0
        %352 = vmatpush2.msra.mxu0 0.0
        %353 = vmatprep.subr.mxu0 0.0
        %354 = vmatpush2.msra.mxu0 0.0
        %355 = vmatprep.subr.mxu0 0.0
        %356 = vmatpush2.msra.mxu0 0.0
        %357 = vmatprep.subr.mxu0 0.0
        %358 = vmatpush2.msra.mxu0 0.0
        %359 = vmatprep.subr.mxu0 0.0
        %360 = vmatpush2.msra.mxu0 0.0
        %361 = vmatprep.subr.mxu0 0.0
        %362 = vmatpush2.msra.mxu0 0.0
        %363 = vmatprep.subr.mxu0 0.0
        %364 = vmatpush2.msra.mxu0 0.0
        %365 = vmatprep.subr.mxu0 0.0
        %366 = vmatpush2.msra.mxu0 0.0
        %367 = vmatprep.subr.mxu0 0.0
        %368 = vmatpush2.msra.mxu0 0.0
        %369 = vmatprep.subr.mxu0 0.0
        %370 = vmatpush2.msra.mxu0 0.0
        %371 = vmatprep.subr.mxu0 0.0
        %372 = vmatpush2.msra.mxu0 0.0
        %373 = vmatprep.subr.mxu0 0.0
        %374 = vmatpush2.msra.mxu0 0.0
        %375 = vmatprep.subr.mxu0 0.0
        %376 = vmatpush2.msra.mxu0 0.0
        %377 = vmatprep.subr.mxu0 0.0
        %378 = vmatpush2.msra.mxu0 0.0
        %379 = vmatprep.subr.mxu0 0.0
        %380 = vmatpush2.msra.mxu0 0.0
        %381 = vmatprep.subr.mxu0 0.0
        %382 = vmatpush2.msra.mxu0 0.0
        %383 = vmatprep.mubr.f32.mxu0 0.0
        %384 = vmatmul.mubr.f32.gmra.mxu0 %v313
        %v385 = vpop.f32.mrf.mxu0
        %v386 = vadd.f32 0.0, %v385
        %v387 = vpop.f32.mrf.mxu0
        %388 = vdwg.mxu0
        %vm389 = vcmask 97280
        %v391 = vsel %vm389, %v306, 0
        %v394 = vsel %vm315, %v308, 0
        %396 = vmatprep.subr.mxu0 0.0
        %397 = vmatpush1.msra.mxu0 0.0
        %398 = vmatprep.subr.mxu0 0.0
        %399 = vmatpush1.msra.mxu0 0.0
        %400 = vmatprep.subr.mxu0 0.0
        %401 = vmatpush1.msra.mxu0 0.0
        %402 = vmatprep.subr.mxu0 0.0
        %403 = vmatpush1.msra.mxu0 0.0
        %404 = vmatprep.subr.mxu0 0.0
        %405 = vmatpush1.msra.mxu0 0.0
        %406 = vmatprep.subr.mxu0 0.0
        %407 = vmatpush1.msra.mxu0 0.0
        %408 = vmatprep.subr.mxu0 0.0
        %409 = vmatpush1.msra.mxu0 0.0
        %410 = vmatprep.subr.mxu0 0.0
        %411 = vmatpush1.msra.mxu0 0.0
        %412 = vmatprep.subr.mxu0 0.0
        %413 = vmatpush1.msra.mxu0 0.0
        %414 = vmatprep.subr.mxu0 0.0
        %415 = vmatpush1.msra.mxu0 0.0
        %416 = vmatprep.subr.mxu0 0.0
        %417 = vmatpush1.msra.mxu0 0.0
        %418 = vmatprep.subr.mxu0 0.0
        %419 = vmatpush1.msra.mxu0 0.0
        %420 = vmatprep.subr.mxu0 0.0
        %421 = vmatpush1.msra.mxu0 0.0
        %422 = vmatprep.subr.mxu0 0.0
        %423 = vmatpush1.msra.mxu0 0.0
        %424 = vmatprep.subr.mxu0 0.0
        %425 = vmatpush1.msra.mxu0 %v394
        %426 = vmatprep.subr.mxu0 0.0
        %427 = vmatpush1.msra.mxu0 %v307
        %428 = vmatprep.subr.mxu0 0.0
        %429 = vmatpush2.msra.mxu0 0.0
        %430 = vmatprep.subr.mxu0 0.0
        %431 = vmatpush2.msra.mxu0 0.0
        %432 = vmatprep.subr.mxu0 0.0
        %433 = vmatpush2.msra.mxu0 0.0
        %434 = vmatprep.subr.mxu0 0.0
        %435 = vmatpush2.msra.mxu0 0.0
        %436 = vmatprep.subr.mxu0 0.0
        %437 = vmatpush2.msra.mxu0 0.0
        %438 = vmatprep.subr.mxu0 0.0
        %439 = vmatpush2.msra.mxu0 0.0
        %440 = vmatprep.subr.mxu0 0.0
        %441 = vmatpush2.msra.mxu0 0.0
        %442 = vmatprep.subr.mxu0 0.0
        %443 = vmatpush2.msra.mxu0 0.0
        %444 = vmatprep.subr.mxu0 0.0
        %445 = vmatpush2.msra.mxu0 0.0
        %446 = vmatprep.subr.mxu0 0.0
        %447 = vmatpush2.msra.mxu0 0.0
        %448 = vmatprep.subr.mxu0 0.0
        %449 = vmatpush2.msra.mxu0 0.0
        %450 = vmatprep.subr.mxu0 0.0
        %451 = vmatpush2.msra.mxu0 0.0
        %452 = vmatprep.subr.mxu0 0.0
        %453 = vmatpush2.msra.mxu0 0.0
        %454 = vmatprep.subr.mxu0 0.0
        %455 = vmatpush2.msra.mxu0 0.0
        %456 = vmatprep.subr.mxu0 0.0
        %457 = vmatpush2.msra.mxu0 0.0
        %458 = vmatprep.subr.mxu0 0.0
        %459 = vmatpush2.msra.mxu0 0.0
        %460 = vmatprep.mubr.f32.mxu0 0.0
        %461 = vmatmul.mubr.f32.gmra.mxu0 %v391
        %v462 = vpop.f32.mrf.mxu0
        %v463 = vadd.f32 %v386, %v462
        %v464 = vpop.f32.mrf.mxu0
        %465 = vdwg.mxu0
        %v466 = vld [vmem:[%s5] sm:$0x1]
        %v467 = vlaneseq
        %v468 = vshrl.u32 %v467, 7
        %v469 = vsub.s32 0, %v468
        %v470 = vrot.slane %v466, %v469
        %v471 = vadd.f32 %v463, %v470
        %v472 = vld [vmem:[%s5 + $0x1] sm:$0x1]
        %v473 = vld [vmem:[%s5 + $0x2] sm:$0x1]
        %vm474 = vcmask 261120
        %v475 = vsel %vm474, %v471, 0.0
        %476 = vadd.xlane.f32.xlu0 %v475
        %v477 = vpop.xlane.xlu0 %476
        %v478 = vrcp.pop 32.0
        %v479 = vmul.f32 %v477, %v478
        %v480 = vsub.f32 %v471, %v479
        %v481 = vmul.f32 %v480, %v480
        %v482 = vsel %vm474, %v481, 0.0
        %483 = vadd.xlane.f32.xlu0 %v482
        %v484 = vpop.xlane.xlu0 %483
        %v485 = vmul.f32 %v484, %v478
        %v486 = vadd.f32 %v485, 1e-05
        %v487 = vrsqrt.pop %v486
        %v488 = vmul.f32 %v480, %v487
        %v489 = vlaneseq
        %v490 = vshrl.u32 %v489, 7
        %v491 = vsub.s32 0, %v490
        %v492 = vrot.slane %v472, %v491
        %v493 = vmul.f32 %v488, %v492
        %v494 = vlaneseq
        %v495 = vshrl.u32 %v494, 7
        %v496 = vsub.s32 0, %v495
        %v497 = vrot.slane %v473, %v496
        %v498 = vadd.f32 %v493, %v497
        %v499 = vmax.f32 %v498, 0.0
        %v500 = vld [vmem:[#allocation6] sm:$0xff]
        %v501 = vld [vmem:[#allocation6 + $0x8] sm:$0xff]
        %v502 = vld [vmem:[#allocation6 + $0x10] sm:$0xff]
        %v503 = vld [vmem:[#allocation6 + $0x18] sm:$0xff]
        %v504 = vld [vmem:[%s5 + $0x3] sm:$0x1]
        %v505 = vlaneseq
        %v506 = vshrl.u32 %v505, 7
        %v507 = vsub.s32 0, %v506
        %v508 = vrot.slane %v504, %v507
        %v510 = vsel %vm474, %v499, 0
        %512 = vmatprep.subr.mxu0 0.0
        %513 = vmatpush1.msra.mxu0 0.0
        %514 = vmatprep.subr.mxu0 0.0
        %515 = vmatpush1.msra.mxu0 0.0
        %516 = vmatprep.subr.mxu0 0.0
        %517 = vmatpush1.msra.mxu0 0.0
        %518 = vmatprep.subr.mxu0 0.0
        %519 = vmatpush1.msra.mxu0 0.0
        %520 = vmatprep.subr.mxu0 0.0
        %521 = vmatpush1.msra.mxu0 0.0
        %522 = vmatprep.subr.mxu0 0.0
        %523 = vmatpush1.msra.mxu0 0.0
        %524 = vmatprep.subr.mxu0 0.0
        %525 = vmatpush1.msra.mxu0 0.0
        %526 = vmatprep.subr.mxu0 0.0
        %527 = vmatpush1.msra.mxu0 0.0
        %528 = vmatprep.subr.mxu0 0.0
        %529 = vmatpush1.msra.mxu0 0.0
        %530 = vmatprep.subr.mxu0 0.0
        %531 = vmatpush1.msra.mxu0 0.0
        %532 = vmatprep.subr.mxu0 0.0
        %533 = vmatpush1.msra.mxu0 0.0
        %534 = vmatprep.subr.mxu0 0.0
        %535 = vmatpush1.msra.mxu0 0.0
        %536 = vmatprep.subr.mxu0 0.0
        %537 = vmatpush1.msra.mxu0 %v503
        %538 = vmatprep.subr.mxu0 0.0
        %539 = vmatpush1.msra.mxu0 %v502
        %540 = vmatprep.subr.mxu0 0.0
        %541 = vmatpush1.msra.mxu0 %v501
        %542 = vmatprep.subr.mxu0 0.0
        %543 = vmatpush1.msra.mxu0 %v500
        %544 = vmatprep.subr.mxu0 0.0
        %545 = vmatpush2.msra.mxu0 0.0
        %546 = vmatprep.subr.mxu0 0.0
        %547 = vmatpush2.msra.mxu0 0.0
        %548 = vmatprep.subr.mxu0 0.0
        %549 = vmatpush2.msra.mxu0 0.0
        %550 = vmatprep.subr.mxu0 0.0
        %551 = vmatpush2.msra.mxu0 0.0
        %552 = vmatprep.subr.mxu0 0.0
        %553 = vmatpush2.msra.mxu0 0.0
        %554 = vmatprep.subr.mxu0 0.0
        %555 = vmatpush2.msra.mxu0 0.0
        %556 = vmatprep.subr.mxu0 0.0
        %557 = vmatpush2.msra.mxu0 0.0
        %558 = vmatprep.subr.mxu0 0.0
        %559 = vmatpush2.msra.mxu0 0.0
        %560 = vmatprep.subr.mxu0 0.0
        %561 = vmatpush2.msra.mxu0 0.0
        %562 = vmatprep.subr.mxu0 0.0
        %563 = vmatpush2.msra.mxu0 0.0
        %564 = vmatprep.subr.mxu0 0.0
        %565 = vmatpush2.msra.mxu0 0.0
        %566 = vmatprep.subr.mxu0 0.0
        %567 = vmatpush2.msra.mxu0 0.0
        %568 = vmatprep.subr.mxu0 0.0
        %569 = vmatpush2.msra.mxu0 0.0
        %570 = vmatprep.subr.mxu0 0.0
        %571 = vmatpush2.msra.mxu0 0.0
        %572 = vmatprep.subr.mxu0 0.0
        %573 = vmatpush2.msra.mxu0 0.0
        %574 = vmatprep.subr.mxu0 0.0
        %575 = vmatpush2.msra.mxu0 0.0
        %576 = vmatprep.mubr.f32.mxu0 0.0
        %577 = vmatmul.mubr.f32.gmra.mxu0 %v510
        %v578 = vpop.f32.mrf.mxu0
        %v579 = vadd.f32 %v508, %v578
        %v580 = vpop.f32.mrf.mxu0
        %581 = vdwg.mxu0
        %v582 = vld [vmem:[%s5 + $0x4] sm:$0x1]
        %v583 = vld [vmem:[%s5 + $0x5] sm:$0x1]
        %v584 = vsel %vm474, %v579, 0.0
        %585 = vadd.xlane.f32.xlu0 %v584
        %v586 = vpop.xlane.xlu0 %585
        %v587 = vmul.f32 %v586, %v478
        %v588 = vsub.f32 %v579, %v587
        %v589 = vmul.f32 %v588, %v588
        %v590 = vsel %vm474, %v589, 0.0
        %591 = vadd.xlane.f32.xlu0 %v590
        %v592 = vpop.xlane.xlu0 %591
        %v593 = vmul.f32 %v592, %v478
        %v594 = vadd.f32 %v593, 1e-05
        %v595 = vrsqrt.pop %v594
        %v596 = vmul.f32 %v588, %v595
        %v597 = vlaneseq
        %v598 = vshrl.u32 %v597, 7
        %v599 = vsub.s32 0, %v598
        %v600 = vrot.slane %v582, %v599
        %v601 = vmul.f32 %v596, %v600
        %v602 = vlaneseq
        %v603 = vshrl.u32 %v602, 7
        %v604 = vsub.s32 0, %v603
        %v605 = vrot.slane %v583, %v604
        %v606 = vadd.f32 %v601, %v605
        %v607 = vmax.f32 %v606, 0.0
        %v608 = vld [vmem:[%s5 + $0x7] sm:$0x1]
        %v609 = vlaneseq
        %v610 = vshrl.u32 %v609, 7
        %v611 = vsub.s32 0, %v610
        %v612 = vrot.slane %v608, %v611
        %v613 = vmul.f32 %v607, %v612
        %v614 = vsel %vm474, %v613, 0.0
        %615 = vadd.xlane.f32.xlu0 %v614
        %v616 = vpop.xlane.xlu0 %615
        %v617 = vld [vmem:[%s5 + $0x6] sm:$0x1]
        %v618 = vlaneseq
        %v619 = vshrl.u32 %v618, 7
        %v620 = vsub.s32 0, %v619
        %v621 = vrot.slane %v617, %v620
        %v622 = vadd.f32 %v616, %v621
        %vm623 = vcmask 7168
        %624 = vst.msk [vmem:[%s305] sm:$0xff] %vm623, %v622
        %p625 = scmp.lt.s32.totalorder %s19, 1
        %s626 = scalar_select %p625, %s19, 1
        %s627 = smul.addr %s626, 8
        %s628 = scalar_lea.vmem %s6, %s627
        // Predicated region
        $region57: #{tpu_custom_call.1} parent=43 // pred_check
          %p629 = pneg %p173
        $region58: #{tpu_custom_call.1} parent=43 // pred_check_branch
          %631 = sbr.rel (%p629) target = $region60
        $region59: #{tpu_custom_call.1} parent=43 // pred_region
          _
        $region60: #{tpu_custom_call.1} parent=43 // pred_fallthru
          _
      $region44: #{tpu_custom_call.1} parent=5 // pred_fallthru
        _
      %p632 = scmp.le.s32.totalorder 2, %s14
      // Predicated region
      $region61: #{tpu_custom_call.1} parent=5 // pred_check
        %p633 = pneg %p632
      $region62: #{tpu_custom_call.1} parent=5 // pred_check_branch
        %635 = sbr.rel (%p633) target = $region64
      $region63: #{tpu_custom_call.1} parent=5 // pred_region
        %s636 = ssub.s32 %s14, 2
        // Predicated region
        $region65: #{tpu_custom_call.1} parent=63 // pred_check
          %p637 = pneg %p179
        $region66: #{tpu_custom_call.1} parent=63 // pred_check_branch
          %639 = sbr.rel (%p637) target = $region68
        $region67: #{tpu_custom_call.1} parent=63 // pred_region
          %p640 = scmp.lt.s32.totalorder %s20, 1
          %s641 = scalar_select %p640, %s20, 1
          %s642 = smul.addr %s641, 8
          %s643 = scalar_lea.vmem %s6, %s642
        $region68: #{tpu_custom_call.1} parent=63 // pred_fallthru
          _
      $region64: #{tpu_custom_call.1} parent=5 // pred_fallthru
        _
    $region6: #{tpu_custom_call.1} parent=1 // loop_footer
      %s18 = sadd.s32 1, %s14
    $region7: #{tpu_custom_call.1} parent=1 // loop_footer_branch
      %13 = sbr.rel target = $region3
    $region8: #{tpu_custom_call.1} parent=1 // loop_exit
      _
    %644 = vsyncpa [#allocation3], 1
    %s645 = scalar_lea.sflag [#allocation3], 1
    %646 = vsyncpa %s645, 1
    %647 = vsyncpa [#allocation5], 1

</llo_original>
